<compile_context>
chip_gen: v7x
topology: tpu7x:2x2x1
jax: 0.10.0
libtpu: 0.0.40
codegen_flags: <defaults>
</compile_context>

<pallas_src>
import functools

import jax
import jax.numpy as jnp
from jax.experimental import pallas as pl
from jax.experimental.pallas import tpu as pltpu

_LANE = 128
_SUBLANE = 8


def _round_up(n, m):
    return ((n + m - 1) // m) * m


def _pad2d(x, rows, cols):
    r, c = x.shape
    return jnp.pad(x, ((0, rows - r), (0, cols - c)))


# ----------------------------------------------------------------------------
# Fused kernel: all SAGEConv layers in one invocation.
# Ref order: h0, then per layer (adj, w_cat, bias, [dropout_mask]) , out.
# ----------------------------------------------------------------------------
def _fused_sage_kernel(*refs, n_layers, dst_pad, apply_dropout):
    out_ref = refs[-1]
    in_refs = refs[:-1]
    idx = [0]

    def nxt():
        r = in_refs[idx[0]]
        idx[0] += 1
        return r

    h = nxt()[...]                                        # (S0p, F0p) bf16
    for l in range(n_layers):
        adj = nxt()[...]                                  # (Dlp, Slp)  bf16
        w_cat = nxt()[...]                                # (2*Flp, Olp) bf16
        b = nxt()[...]                                    # (1, Olp)    f32
        last = l == n_layers - 1
        d = dst_pad[l]

        # Mean neighbor aggregation on the MXU (f32 accumulate).
        h_neigh = jnp.dot(adj, h, preferred_element_type=jnp.float32)
        h_neigh = h_neigh.astype(jnp.bfloat16)            # (Dlp, Flp)
        # Self features: dst nodes are the first d src nodes.
        h_self = h[:d, :]                                 # (Dlp, Flp) bf16

        # Merged matmul: [h_self | h_neigh] @ [W_self ; W_neigh]  (K = 2*Flp).
        x_cat = jnp.concatenate([h_self, h_neigh], axis=-1)
        z = jnp.dot(x_cat, w_cat, preferred_element_type=jnp.float32) + b

        if not last:
            z = jnp.maximum(z, 0.0)                       # relu (f32 epilogue)
            if apply_dropout:
                z = z * nxt()[...]                        # pre-scaled keep mask
            h = z.astype(jnp.bfloat16)
        else:
            out_ref[...] = z.astype(out_ref.dtype)


# ----------------------------------------------------------------------------
# Wrapper: pads/casts operands, builds the single fused pallas_call.
# ----------------------------------------------------------------------------
def sage_forward(blocks, x, params, *, p_drop=0.0, training=False,
                 dropout_key=None):
    n_layers = len(params)
    assert len(blocks) == n_layers
    apply_dropout = bool(training and p_drop > 0.0 and n_layers > 1)
    if apply_dropout and dropout_key is None:
        raise ValueError("training-mode dropout requires a runtime dropout_key")

    # Padded node counts (sublane multiples); enforce DGL block chaining.
    src_pad = [_round_up(b.shape[1], _SUBLANE) for b in blocks]
    dst_pad = [_round_up(b.shape[0], _SUBLANE) for b in blocks]
    for l in range(1, n_layers):
        assert blocks[l].shape[1] == blocks[l - 1].shape[0], "block chain mismatch"
        src_pad[l] = dst_pad[l - 1]

    # Padded feature widths (lane-dense 128 multiples).
    fin_pad = [_round_up(p[0].shape[0], _LANE) for p in params]
    fout_pad = [_round_up(p[0].shape[1], _LANE) for p in params]
    for l in range(1, n_layers):
        assert params[l][0].shape[0] == params[l - 1][0].shape[1]
        fin_pad[l] = fout_pad[l - 1]

    inputs = [_pad2d(x, src_pad[0], fin_pad[0]).astype(jnp.bfloat16)]

    drop_keys = (jax.random.split(dropout_key, n_layers - 1)
                 if apply_dropout else None)
    keep = 1.0 - p_drop

    for l, (adj, (w_self, w_neigh, bias)) in enumerate(zip(blocks, params)):
        inputs.append(_pad2d(adj, dst_pad[l], src_pad[l]).astype(jnp.bfloat16))
        w_cat = jnp.concatenate(
            [_pad2d(w_self, fin_pad[l], fout_pad[l]),
             _pad2d(w_neigh, fin_pad[l], fout_pad[l])], axis=0)
        inputs.append(w_cat.astype(jnp.bfloat16))
        inputs.append(_pad2d(bias.reshape(1, -1), 1, fout_pad[l])
                      .astype(jnp.float32))
        if apply_dropout and l != n_layers - 1:
            m = jax.random.bernoulli(drop_keys[l], keep,
                                     (dst_pad[l], fout_pad[l]))
            inputs.append(m.astype(jnp.float32) * (1.0 / keep))

    kernel = functools.partial(_fused_sage_kernel, n_layers=n_layers,
                               dst_pad=tuple(dst_pad),
                               apply_dropout=apply_dropout)

    compiler_params = None
    if jax.default_backend() == "tpu":
        compiler_params = pltpu.CompilerParams(
            vmem_limit_bytes=32 * 1024 * 1024)

    out_p = pl.pallas_call(
        kernel,
        out_shape=jax.ShapeDtypeStruct((dst_pad[-1], fout_pad[-1]),
                                       jnp.float32),
        in_specs=[pl.BlockSpec(memory_space=pltpu.MemorySpace.VMEM)]
        * len(inputs),
        out_specs=pl.BlockSpec(memory_space=pltpu.MemorySpace.VMEM),
        compiler_params=compiler_params,
    )(*inputs)

    num_dst_last = blocks[-1].shape[0]
    n_classes = params[-1][0].shape[1]
    return out_p[:num_dst_last, :n_classes]


# ----------------------------------------------------------------------------
# Pure-JAX reference (same bf16-input / f32-accumulate numerics, eval mode).
# ----------------------------------------------------------------------------
def sage_reference_eval(blocks, x, params):
    h = x.astype(jnp.bfloat16)
    n_layers = len(params)
    for l, (adj, (w_self, w_neigh, bias)) in enumerate(zip(blocks, params)):
        num_dst = adj.shape[0]
        a = adj.astype(jnp.bfloat16)
        hn = jnp.dot(a, h, preferred_element_type=jnp.float32)
        hn = hn.astype(jnp.bfloat16)
        hs = h[:num_dst, :]
        z = (jnp.dot(hs, w_self.astype(jnp.bfloat16),
                     preferred_element_type=jnp.float32)
             + jnp.dot(hn, w_neigh.astype(jnp.bfloat16),
                       preferred_element_type=jnp.float32)
             + bias)
        if l != n_layers - 1:
            z = jnp.maximum(z, 0.0)
            h = z.astype(jnp.bfloat16)
        else:
            return z


# ----------------------------------------------------------------------------
# Deterministic example data.
# ----------------------------------------------------------------------------
def make_block(key, num_dst, num_src, p_edge=0.3):
    """Dense block adjacency [num_dst, num_src], row-normalized (mean agg)."""
    adj = jax.random.bernoulli(key, p_edge, (num_dst, num_src)).astype(jnp.float32)
    eye = jnp.zeros((num_dst, num_src), jnp.float32).at[
        jnp.arange(num_dst), jnp.arange(num_dst)].set(1.0)
    adj = jnp.maximum(adj, eye)            # at least one neighbor per dst node
    deg = jnp.sum(adj, axis=1, keepdims=True)
    return adj / deg


def init_params(key, in_feats, n_hidden, n_classes, n_layers):
    """Deterministic SAGEConv params: (W_self, W_neigh, bias) per layer."""
    dims = [in_feats] + [n_hidden] * (n_layers - 1) + [n_classes]
    params = []
    for l in range(n_layers):
        d_in, d_out = dims[l], dims[l + 1]
        key, k1, k2 = jax.random.split(key, 3)
        scale = 1.0 / jnp.sqrt(jnp.float32(d_in))
        w_self = jax.random.normal(k1, (d_in, d_out), jnp.float32) * scale
        w_neigh = jax.random.normal(k2, (d_in, d_out), jnp.float32) * scale
        bias = jnp.zeros((1, d_out), jnp.float32)
        params.append((w_self, w_neigh, bias))
    return params


if __name__ == "__main__":
    # Small SAGE: in_feats=32, n_hidden=32, n_classes=16, n_layers=2,
    # activation=relu, dropout=0.5
    in_feats, n_hidden, n_classes, n_layers = 32, 32, 16, 2
    p_drop = 0.5

    key = jax.random.PRNGKey(0)
    k_feat, k_b0, k_b1, k_par, k_drop = jax.random.split(key, 5)

    # block 0: 64 src -> 32 dst ; block 1: 32 src -> 16 dst
    num_src0, num_dst0 = 64, 32
    num_src1, num_dst1 = 32, 16
    blocks = [make_block(k_b0, num_dst0, num_src0),
              make_block(k_b1, num_dst1, num_src1)]

    x = jax.random.normal(k_feat, (num_src0, in_feats), jnp.float32)
    params = init_params(k_par, in_feats, n_hidden, n_classes, n_layers)

    # Eval-mode forward checked against a pure-JAX reference.
    out_eval = jax.block_until_ready(
        sage_forward(blocks, x, params, p_drop=p_drop, training=False))
    ref_eval = jax.block_until_ready(sage_reference_eval(blocks, x, params))
    assert out_eval.shape == (num_dst1, n_classes), out_eval.shape
    assert jnp.allclose(out_eval, ref_eval, rtol=5e-2, atol=5e-2), (
        float(jnp.max(jnp.abs(out_eval - ref_eval))))

    # Training-mode forward (dropout mask from a runtime key).
    out_train = jax.block_until_ready(
        sage_forward(blocks, x, params, p_drop=p_drop, training=True,
                     dropout_key=k_drop))
    assert out_train.shape == (num_dst1, n_classes), out_train.shape
    assert jnp.all(jnp.isfinite(out_train))

    print("KERNEL_OK")
</pallas_src>

<mosaic_0001>
module attributes {stable_mosaic.version = 11 : i64} {
  func.func @_fused_sage_kernel(%arg0: memref<64x128xbf16, #tpu.memory_space<vmem>>, %arg1: memref<32x64xbf16, #tpu.memory_space<vmem>>, %arg2: memref<256x128xbf16, #tpu.memory_space<vmem>>, %arg3: memref<1x128xf32, #tpu.memory_space<vmem>>, %arg4: memref<16x32xbf16, #tpu.memory_space<vmem>>, %arg5: memref<256x128xbf16, #tpu.memory_space<vmem>>, %arg6: memref<1x128xf32, #tpu.memory_space<vmem>>, %arg7: memref<16x128xf32, #tpu.memory_space<vmem>>) attributes {dimension_semantics = [], scalar_prefetch = 0 : i64, scratch_operands = 0 : i64, tpu.core_type = #tpu.core_type<tc>} {
    %c0 = arith.constant 0 : index
    %c0_0 = arith.constant 0 : index
    %0 = vector.load %arg0[%c0, %c0_0] : memref<64x128xbf16, #tpu.memory_space<vmem>>, vector<64x128xbf16>
    %c0_1 = arith.constant 0 : index
    %c0_2 = arith.constant 0 : index
    %1 = vector.load %arg1[%c0_1, %c0_2] : memref<32x64xbf16, #tpu.memory_space<vmem>>, vector<32x64xbf16>
    %c0_3 = arith.constant 0 : index
    %c0_4 = arith.constant 0 : index
    %2 = vector.load %arg2[%c0_3, %c0_4] : memref<256x128xbf16, #tpu.memory_space<vmem>>, vector<256x128xbf16>
    %c0_5 = arith.constant 0 : index
    %c0_6 = arith.constant 0 : index
    %3 = vector.load %arg3[%c0_5, %c0_6] : memref<1x128xf32, #tpu.memory_space<vmem>>, vector<1x128xf32>
    %cst = arith.constant dense<0.000000e+00> : vector<32x128xf32>
    %4 = tpu.matmul %1, %0, %cst {dimension_numbers = #tpu.dot_dimension_numbers<[1], [0], [0], [1], [0, 0, 1, 1], [], []>} : vector<32x64xbf16>, vector<64x128xbf16>, vector<32x128xf32> -> vector<32x128xf32>
    %5 = arith.truncf %4 : vector<32x128xf32> to vector<32x128xbf16>
    %6 = vector.extract_strided_slice %0 {offsets = [0, 0], sizes = [32, 128], strides = [1, 1]} : vector<64x128xbf16> to vector<32x128xbf16>
    %7 = tpu.concatenate %6, %5 in 1 : vector<32x128xbf16>, vector<32x128xbf16> -> vector<32x256xbf16>
    %cst_7 = arith.constant dense<0.000000e+00> : vector<32x128xf32>
    %8 = tpu.matmul %7, %2, %cst_7 {dimension_numbers = #tpu.dot_dimension_numbers<[1], [0], [0], [1], [0, 0, 1, 1], [], []>} : vector<32x256xbf16>, vector<256x128xbf16>, vector<32x128xf32> -> vector<32x128xf32>
    %9 = vector.broadcast %3 : vector<1x128xf32> to vector<32x128xf32>
    %10 = arith.addf %8, %9 : vector<32x128xf32>
    %cst_8 = arith.constant 0.000000e+00 : f32
    %11 = vector.broadcast %cst_8 : f32 to vector<32x128xf32>
    %12 = arith.maximumf %10, %11 : vector<32x128xf32>
    %13 = arith.truncf %12 : vector<32x128xf32> to vector<32x128xbf16>
    %c0_9 = arith.constant 0 : index
    %c0_10 = arith.constant 0 : index
    %14 = vector.load %arg4[%c0_9, %c0_10] : memref<16x32xbf16, #tpu.memory_space<vmem>>, vector<16x32xbf16>
    %c0_11 = arith.constant 0 : index
    %c0_12 = arith.constant 0 : index
    %15 = vector.load %arg5[%c0_11, %c0_12] : memref<256x128xbf16, #tpu.memory_space<vmem>>, vector<256x128xbf16>
    %c0_13 = arith.constant 0 : index
    %c0_14 = arith.constant 0 : index
    %16 = vector.load %arg6[%c0_13, %c0_14] : memref<1x128xf32, #tpu.memory_space<vmem>>, vector<1x128xf32>
    %cst_15 = arith.constant dense<0.000000e+00> : vector<16x128xf32>
    %17 = tpu.matmul %14, %13, %cst_15 {dimension_numbers = #tpu.dot_dimension_numbers<[1], [0], [0], [1], [0, 0, 1, 1], [], []>} : vector<16x32xbf16>, vector<32x128xbf16>, vector<16x128xf32> -> vector<16x128xf32>
    %18 = arith.truncf %17 : vector<16x128xf32> to vector<16x128xbf16>
    %19 = vector.extract_strided_slice %13 {offsets = [0, 0], sizes = [16, 128], strides = [1, 1]} : vector<32x128xbf16> to vector<16x128xbf16>
    %20 = tpu.concatenate %19, %18 in 1 : vector<16x128xbf16>, vector<16x128xbf16> -> vector<16x256xbf16>
    %cst_16 = arith.constant dense<0.000000e+00> : vector<16x128xf32>
    %21 = tpu.matmul %20, %15, %cst_16 {dimension_numbers = #tpu.dot_dimension_numbers<[1], [0], [0], [1], [0, 0, 1, 1], [], []>} : vector<16x256xbf16>, vector<256x128xbf16>, vector<16x128xf32> -> vector<16x128xf32>
    %22 = vector.broadcast %16 : vector<1x128xf32> to vector<16x128xf32>
    %23 = arith.addf %21, %22 : vector<16x128xf32>
    %c0_17 = arith.constant 0 : index
    %c0_18 = arith.constant 0 : index
    %24 = vector.load %arg7[%c0_17, %c0_18] : memref<16x128xf32, #tpu.memory_space<vmem>>, vector<16x128xf32>
    tpu.vector_store %arg7[%c0_17, %c0_18], %23 {strides = array<i32>} : memref<16x128xf32, #tpu.memory_space<vmem>>, vector<16x128xf32>,
    return
  }
}

</mosaic_0001>

<llo_original>
// kernel: tpu_custom_call.1
$region0: #{tpu_custom_call.1}
  #allocation0 [shape = 'u32[]', space=smem, size = 0x4, offset = 0x4, fixed_abs, tag = 'smem constant byte address 0x4 - core index']
  #allocation1 [shape = 'u32[144,128]{1,0:T(1,128)}', space=vmem, size = 0x12000, scoped, tag = 'internal scratch']
  %s0 = inlined_call_operand.hbm [shape: bf16[64,128], index: 0, kind: input, shape index: {}]
  %s1 = inlined_call_operand.hbm [shape: bf16[32,64], index: 1, kind: input, shape index: {}]
  %s2 = inlined_call_operand.hbm [shape: bf16[256,128], index: 2, kind: input, shape index: {}]
  %s3 = inlined_call_operand.vmem [shape: f32[1,128], index: 3, kind: input, shape index: {}]
  %s4 = inlined_call_operand.vmem [shape: bf16[16,32], index: 4, kind: input, shape index: {}]
  %s5 = inlined_call_operand.hbm [shape: bf16[256,128], index: 5, kind: input, shape index: {}]
  %s6 = inlined_call_operand.vmem [shape: f32[1,128], index: 6, kind: input, shape index: {}]
  %s7 = inlined_call_operand.hbm [shape: f32[16,128], index: 7, kind: output, shape index: {}]
  %s8 = sld [smem:[#allocation0]]
  $region54: #{tpu_custom_call.1} parent=0
    _
  %s10 = ssub.s32 1, %s8
  %s11 = scalar_select 0, %s10, %s8
  $region1: #{tpu_custom_call.1} parent=0
    #allocation2 [shape = 'u8[16384]{0}', space=vmem, size = 0x4000, scoped, tag = 'input window, operand 0, single buffered']
    #allocation3 [shape = 's32[1]{0}', space=sflag, size = 0x4, scoped, tag = 'scoped memory for tpu_custom_call.1']
    #allocation4 [shape = 's32[1]{0}', space=sflag, size = 0x4, scoped, tag = 'scoped memory for tpu_custom_call.1']
    #allocation5 [shape = 'u8[8192]{0}', space=vmem, size = 0x2000, scoped, tag = 'input window, operand 1, single buffered']
    #allocation6 [shape = 's32[1]{0}', space=sflag, size = 0x4, scoped, tag = 'scoped memory for tpu_custom_call.1']
    #allocation7 [shape = 'u8[65536]{0}', space=vmem, size = 0x10000, scoped, tag = 'input window, operand 2, single buffered']
    #allocation8 [shape = 'u8[65536]{0}', space=vmem, size = 0x10000, scoped, tag = 'input window, operand 5, single buffered']
    #allocation9 [shape = 's32[1]{0}', space=sflag, size = 0x4, scoped, tag = 'scoped memory for tpu_custom_call.1']
    #allocation10 [shape = 'u8[8192]{0}', space=vmem, size = 0x2000, scoped, tag = 'output window, operand 0, single buffered']
    %12 = vsyncpa [#allocation3], 0
    %13 = vsyncpa [#allocation6], 0
    %14 = vsyncpa [#allocation9], 0
    %15 = vsyncpa [#allocation4], 0
    // Predicated region
    $region2: #{tpu_custom_call.1} parent=1 // pred_check
      _
    $region3: #{tpu_custom_call.1} parent=1 // pred_check_branch
      %17 = sbr.rel (0) target = $region5
    $region4: #{tpu_custom_call.1} parent=1 // pred_region
      %s19 = ssub.s32 512, 512
      %20 = vsyncadd [#allocation3], %s19
      %s21 = sshll.u32 [#allocation2], 4
      %s22 = int_to_ptr.vmem [resolvable:$true] %s21
      %27 = dma.hbm_to_vmem [thread:$0]  %s0, 512, %s22, [#allocation3], 64, 64, 4
    $region5: #{tpu_custom_call.1} parent=1 // pred_fallthru
      _
    // Predicated region
    $region6: #{tpu_custom_call.1} parent=1 // pred_check
      _
    $region7: #{tpu_custom_call.1} parent=1 // pred_check_branch
      %29 = sbr.rel (0) target = $region9
    $region8: #{tpu_custom_call.1} parent=1 // pred_region
      %s31 = ssub.s32 256, 256
      %32 = vsyncadd [#allocation6], %s31
      %s33 = sshll.u32 [#allocation5], 4
      %s34 = int_to_ptr.vmem [resolvable:$true] %s33
      %39 = dma.hbm_to_vmem [thread:$0]  %s1, 256, %s34, [#allocation6], 64, 64, 4
    $region9: #{tpu_custom_call.1} parent=1 // pred_fallthru
      _
    // Predicated region
    $region10: #{tpu_custom_call.1} parent=1 // pred_check
      _
    $region11: #{tpu_custom_call.1} parent=1 // pred_check_branch
      %41 = sbr.rel (0) target = $region13
    $region12: #{tpu_custom_call.1} parent=1 // pred_region
      %s43 = ssub.s32 2048, 2048
      %44 = vsyncadd [#allocation6], %s43
      %s45 = sshll.u32 [#allocation7], 4
      %s46 = int_to_ptr.vmem [resolvable:$true] %s45
      %51 = dma.hbm_to_vmem [thread:$0]  %s2, 2048, %s46, [#allocation6], 64, 64, 4
    $region13: #{tpu_custom_call.1} parent=1 // pred_fallthru
      _
    // Predicated region
    $region14: #{tpu_custom_call.1} parent=1 // pred_check
      _
    $region15: #{tpu_custom_call.1} parent=1 // pred_check_branch
      %53 = sbr.rel (0) target = $region17
    $region16: #{tpu_custom_call.1} parent=1 // pred_region
      _
    $region17: #{tpu_custom_call.1} parent=1 // pred_fallthru
      _
    // Predicated region
    $region18: #{tpu_custom_call.1} parent=1 // pred_check
      _
    $region19: #{tpu_custom_call.1} parent=1 // pred_check_branch
      %55 = sbr.rel (0) target = $region21
    $region20: #{tpu_custom_call.1} parent=1 // pred_region
      _
    $region21: #{tpu_custom_call.1} parent=1 // pred_fallthru
      _
    // Predicated region
    $region22: #{tpu_custom_call.1} parent=1 // pred_check
      _
    $region23: #{tpu_custom_call.1} parent=1 // pred_check_branch
      %57 = sbr.rel (0) target = $region25
    $region24: #{tpu_custom_call.1} parent=1 // pred_region
      %s59 = ssub.s32 2048, 2048
      %60 = vsyncadd [#allocation9], %s59
      %s61 = sshll.u32 [#allocation8], 4
      %s62 = int_to_ptr.vmem [resolvable:$true] %s61
      %67 = dma.hbm_to_vmem [thread:$0]  %s5, 2048, %s62, [#allocation9], 64, 64, 4
    $region25: #{tpu_custom_call.1} parent=1 // pred_fallthru
      _
    // Predicated region
    $region26: #{tpu_custom_call.1} parent=1 // pred_check
      _
    $region27: #{tpu_custom_call.1} parent=1 // pred_check_branch
      %69 = sbr.rel (0) target = $region29
    $region28: #{tpu_custom_call.1} parent=1 // pred_region
      _
    $region29: #{tpu_custom_call.1} parent=1 // pred_fallthru
      _
    // Predicated region
    $region30: #{tpu_custom_call.1} parent=1 // pred_check
      _
    $region31: #{tpu_custom_call.1} parent=1 // pred_check_branch
      %71 = sbr.rel (0) target = $region33
    $region32: #{tpu_custom_call.1} parent=1 // pred_region
      %72 = dma.done [#allocation3], 512
    $region33: #{tpu_custom_call.1} parent=1 // pred_fallthru
      _
    // Predicated region
    $region34: #{tpu_custom_call.1} parent=1 // pred_check
      _
    $region35: #{tpu_custom_call.1} parent=1 // pred_check_branch
      %74 = sbr.rel (0) target = $region37
    $region36: #{tpu_custom_call.1} parent=1 // pred_region
      %75 = dma.done [#allocation6], 256
    $region37: #{tpu_custom_call.1} parent=1 // pred_fallthru
      _
    // Predicated region
    $region38: #{tpu_custom_call.1} parent=1 // pred_check
      _
    $region39: #{tpu_custom_call.1} parent=1 // pred_check_branch
      %77 = sbr.rel (0) target = $region41
    $region40: #{tpu_custom_call.1} parent=1 // pred_region
      %78 = dma.done [#allocation6], 2048
    $region41: #{tpu_custom_call.1} parent=1 // pred_fallthru
      _
    // Predicated region
    $region42: #{tpu_custom_call.1} parent=1 // pred_check
      _
    $region43: #{tpu_custom_call.1} parent=1 // pred_check_branch
      %80 = sbr.rel (0) target = $region45
    $region44: #{tpu_custom_call.1} parent=1 // pred_region
      %81 = dma.done [#allocation9], 2048
    $region45: #{tpu_custom_call.1} parent=1 // pred_fallthru
      _
    %v83 = vld [vmem:[#allocation2] sm:$0xf]
    %v84 = vld [vmem:[#allocation2 + $0x4] sm:$0xf]
    %v85 = vld [vmem:[#allocation2 + $0x8] sm:$0xf]
    %v86 = vld [vmem:[#allocation2 + $0xc] sm:$0xf]
    %v87 = vld [vmem:[#allocation2 + $0x10] sm:$0xf]
    %v88 = vld [vmem:[#allocation2 + $0x14] sm:$0xf]
    %v89 = vld [vmem:[#allocation2 + $0x18] sm:$0xf]
    %v90 = vld [vmem:[#allocation2 + $0x1c] sm:$0xf]
    %v91 = vld [vmem:[#allocation5] sm:$0xf]
    %v92 = vld [vmem:[#allocation5 + $0x4] sm:$0xf]
    %v93 = vld [vmem:[#allocation5 + $0x8] sm:$0xf]
    %v94 = vld [vmem:[#allocation5 + $0xc] sm:$0xf]
    %v95 = vld [vmem:[#allocation7] sm:$0xf]
    %v96 = vld [vmem:[#allocation7 + $0x4] sm:$0xf]
    %v97 = vld [vmem:[#allocation7 + $0x8] sm:$0xf]
    %v98 = vld [vmem:[#allocation7 + $0xc] sm:$0xf]
    %v99 = vld [vmem:[#allocation7 + $0x10] sm:$0xf]
    %v100 = vld [vmem:[#allocation7 + $0x14] sm:$0xf]
    %v101 = vld [vmem:[#allocation7 + $0x18] sm:$0xf]
    %v102 = vld [vmem:[#allocation7 + $0x1c] sm:$0xf]
    %v103 = vld [vmem:[#allocation7 + $0x20] sm:$0xf]
    %v104 = vld [vmem:[#allocation7 + $0x24] sm:$0xf]
    %v105 = vld [vmem:[#allocation7 + $0x28] sm:$0xf]
    %v106 = vld [vmem:[#allocation7 + $0x2c] sm:$0xf]
    %v107 = vld [vmem:[#allocation7 + $0x30] sm:$0xf]
    %v108 = vld [vmem:[#allocation7 + $0x34] sm:$0xf]
    %v109 = vld [vmem:[#allocation7 + $0x38] sm:$0xf]
    %v110 = vld [vmem:[#allocation7 + $0x3c] sm:$0xf]
    %v111 = vld [vmem:[#allocation7 + $0x40] sm:$0xf]
    %v112 = vld [vmem:[#allocation7 + $0x44] sm:$0xf]
    %v113 = vld [vmem:[#allocation7 + $0x48] sm:$0xf]
    %v114 = vld [vmem:[#allocation7 + $0x4c] sm:$0xf]
    %v115 = vld [vmem:[#allocation7 + $0x50] sm:$0xf]
    %v116 = vld [vmem:[#allocation7 + $0x54] sm:$0xf]
    %v117 = vld [vmem:[#allocation7 + $0x58] sm:$0xf]
    %v118 = vld [vmem:[#allocation7 + $0x5c] sm:$0xf]
    %v119 = vld [vmem:[#allocation7 + $0x60] sm:$0xf]
    %v120 = vld [vmem:[#allocation7 + $0x64] sm:$0xf]
    %v121 = vld [vmem:[#allocation7 + $0x68] sm:$0xf]
    %v122 = vld [vmem:[#allocation7 + $0x6c] sm:$0xf]
    %v123 = vld [vmem:[#allocation7 + $0x70] sm:$0xf]
    %v124 = vld [vmem:[#allocation7 + $0x74] sm:$0xf]
    %v125 = vld [vmem:[#allocation7 + $0x78] sm:$0xf]
    %v126 = vld [vmem:[#allocation7 + $0x7c] sm:$0xf]
    %v127 = vld [vmem:[%s3] sm:$0x1]
    %v132 = vunpack.c.l.b16 %v91
    %v133 = vunpack.c.l.b16 %v92
    %v134 = vunpack.c.l.b16 %v93
    %v135 = vunpack.c.l.b16 %v94
    %v136 = vpack.c.b16 %v133, %v132
    %v137 = vpack.c.b16 %v135, %v134
    %v146 = vunpack.c.l.b16 %v83
    %v147 = vunpack.c.l.b16 %v84
    %v148 = vunpack.c.l.b16 %v85
    %v149 = vunpack.c.l.b16 %v86
    %v150 = vunpack.c.l.b16 %v87
    %v151 = vunpack.c.l.b16 %v88
    %v152 = vunpack.c.l.b16 %v89
    %v153 = vunpack.c.l.b16 %v90
    %v154 = vpack.c.b16 %v147, %v146
    %v155 = vpack.c.b16 %v149, %v148
    %v156 = vpack.c.b16 %v151, %v150
    %v157 = vpack.c.b16 %v153, %v152
    %vm162 = vcmask 523264
    %v164 = vsel %vm162, %v136, 0
    %v167 = vsel %vm162, %v137, 0
    %169 = vmatprep.subr.bf16.mxu0 0
    %170 = vmatpush1.bf16.msra.mxu0 %v154
    %171 = vmatprep.subr.bf16.mxu0 0
    %172 = vmatpush1.bf16.msra.mxu0 %v155
    %173 = vmatprep.subr.bf16.mxu0 0
    %174 = vmatpush1.bf16.msra.mxu0 %v156
    %175 = vmatprep.subr.bf16.mxu0 0
    %176 = vmatpush1.bf16.msra.mxu0 %v157
    %177 = vmatprep.subr.bf16.mxu0 0
    %178 = vmatpush1.bf16.msra.mxu0 0
    %179 = vmatprep.subr.bf16.mxu0 0
    %180 = vmatpush1.bf16.msra.mxu0 0
    %181 = vmatprep.subr.bf16.mxu0 0
    %182 = vmatpush1.bf16.msra.mxu0 0
    %183 = vmatprep.subr.bf16.mxu0 0
    %184 = vmatpush1.bf16.msra.mxu0 0
    %185 = vmatprep.subr.bf16.mxu0 0
    %186 = vmatpush1.bf16.msra.mxu0 0
    %187 = vmatprep.subr.bf16.mxu0 0
    %188 = vmatpush1.bf16.msra.mxu0 0
    %189 = vmatprep.subr.bf16.mxu0 0
    %190 = vmatpush1.bf16.msra.mxu0 0
    %191 = vmatprep.subr.bf16.mxu0 0
    %192 = vmatpush1.bf16.msra.mxu0 0
    %193 = vmatprep.subr.bf16.mxu0 0
    %194 = vmatpush1.bf16.msra.mxu0 0
    %195 = vmatprep.subr.bf16.mxu0 0
    %196 = vmatpush1.bf16.msra.mxu0 0
    %197 = vmatprep.subr.bf16.mxu0 0
    %198 = vmatpush1.bf16.msra.mxu0 0
    %199 = vmatprep.subr.bf16.mxu0 0
    %200 = vmatpush1.bf16.msra.mxu0 0
    %201 = vmatprep.mubr.bf16.mxu0 0
    %202 = vmatmul.mubr.bf16.gmra.mrb[0].mxu0 %v164
    %v203 = vpop.f32.mrb[0].mxu0
    %v204 = vadd.f32 0.0, %v203
    %v205 = vpop.f32.mrb[0].mxu0
    %v206 = vpop.f32.mrb[0].mxu0
    %v207 = vadd.f32 0.0, %v206
    %v208 = vpop.f32.mrb[0].mxu0
    %209 = vmatprep.mubr.bf16.mxu0 0
    %210 = vmatmul.mubr.bf16.gmra.mrb[0].mxu0 %v167
    %v211 = vpop.f32.mrb[0].mxu0
    %v212 = vadd.f32 0.0, %v211
    %v213 = vpop.f32.mrb[0].mxu0
    %v214 = vpop.f32.mrb[0].mxu0
    %v215 = vadd.f32 0.0, %v214
    %v216 = vpop.f32.mrb[0].mxu0
    %217 = vdwg.mxu0
    %v218 = vpack.c.bf16 %v207, %v204
    %v219 = vpack.c.bf16 %v215, %v212
    %v221 = vlaneseq
    %v222 = vshrl.u32 %v221, 7
    %v223 = vsub.s32 0, %v222
    %v224 = vrot.slane %v127, %v223
    %v258 = vunpack.c.l.b16 %v95
    %v259 = vunpack.c.l.b16 %v96
    %v260 = vunpack.c.l.b16 %v97
    %v261 = vunpack.c.l.b16 %v98
    %v262 = vunpack.c.l.b16 %v99
    %v263 = vunpack.c.l.b16 %v100
    %v264 = vunpack.c.l.b16 %v101
    %v265 = vunpack.c.l.b16 %v102
    %v266 = vunpack.c.l.b16 %v103
    %v267 = vunpack.c.l.b16 %v104
    %v268 = vunpack.c.l.b16 %v105
    %v269 = vunpack.c.l.b16 %v106
    %v270 = vunpack.c.l.b16 %v107
    %v271 = vunpack.c.l.b16 %v108
    %v272 = vunpack.c.l.b16 %v109
    %v273 = vunpack.c.l.b16 %v110
    %v274 = vunpack.c.l.b16 %v111
    %v275 = vunpack.c.l.b16 %v112
    %v276 = vunpack.c.l.b16 %v113
    %v277 = vunpack.c.l.b16 %v114
    %v278 = vunpack.c.l.b16 %v115
    %v279 = vunpack.c.l.b16 %v116
    %v280 = vunpack.c.l.b16 %v117
    %v281 = vunpack.c.l.b16 %v118
    %v282 = vunpack.c.l.b16 %v119
    %v283 = vunpack.c.l.b16 %v120
    %v284 = vunpack.c.l.b16 %v121
    %v285 = vunpack.c.l.b16 %v122
    %v286 = vunpack.c.l.b16 %v123
    %v287 = vunpack.c.l.b16 %v124
    %v288 = vunpack.c.l.b16 %v125
    %v289 = vunpack.c.l.b16 %v126
    %v290 = vpack.c.b16 %v259, %v258
    %v291 = vpack.c.b16 %v261, %v260
    %v292 = vpack.c.b16 %v263, %v262
    %v293 = vpack.c.b16 %v265, %v264
    %v294 = vpack.c.b16 %v267, %v266
    %v295 = vpack.c.b16 %v269, %v268
    %v296 = vpack.c.b16 %v271, %v270
    %v297 = vpack.c.b16 %v273, %v272
    %v298 = vpack.c.b16 %v275, %v274
    %v299 = vpack.c.b16 %v277, %v276
    %v300 = vpack.c.b16 %v279, %v278
    %v301 = vpack.c.b16 %v281, %v280
    %v302 = vpack.c.b16 %v283, %v282
    %v303 = vpack.c.b16 %v285, %v284
    %v304 = vpack.c.b16 %v287, %v286
    %v305 = vpack.c.b16 %v289, %v288
    %322 = vmatprep.subr.bf16.mxu0 0
    %323 = vmatpush1.bf16.msra.mxu0 %v290
    %324 = vmatprep.subr.bf16.mxu0 0
    %325 = vmatpush1.bf16.msra.mxu0 %v291
    %326 = vmatprep.subr.bf16.mxu0 0
    %327 = vmatpush1.bf16.msra.mxu0 %v292
    %328 = vmatprep.subr.bf16.mxu0 0
    %329 = vmatpush1.bf16.msra.mxu0 %v293
    %330 = vmatprep.subr.bf16.mxu0 0
    %331 = vmatpush1.bf16.msra.mxu0 %v294
    %332 = vmatprep.subr.bf16.mxu0 0
    %333 = vmatpush1.bf16.msra.mxu0 %v295
    %334 = vmatprep.subr.bf16.mxu0 0
    %335 = vmatpush1.bf16.msra.mxu0 %v296
    %336 = vmatprep.subr.bf16.mxu0 0
    %337 = vmatpush1.bf16.msra.mxu0 %v297
    %338 = vmatprep.subr.bf16.mxu0 0
    %339 = vmatpush1.bf16.msra.mxu0 %v298
    %340 = vmatprep.subr.bf16.mxu0 0
    %341 = vmatpush1.bf16.msra.mxu0 %v299
    %342 = vmatprep.subr.bf16.mxu0 0
    %343 = vmatpush1.bf16.msra.mxu0 %v300
    %344 = vmatprep.subr.bf16.mxu0 0
    %345 = vmatpush1.bf16.msra.mxu0 %v301
    %346 = vmatprep.subr.bf16.mxu0 0
    %347 = vmatpush1.bf16.msra.mxu0 %v302
    %348 = vmatprep.subr.bf16.mxu0 0
    %349 = vmatpush1.bf16.msra.mxu0 %v303
    %350 = vmatprep.subr.bf16.mxu0 0
    %351 = vmatpush1.bf16.msra.mxu0 %v304
    %352 = vmatprep.subr.bf16.mxu0 0
    %353 = vmatpush1.bf16.msra.mxu0 %v305
    %354 = vmatprep.mubr.bf16.mxu0 %v218
    %355 = vmatmul.mubr.bf16.gmra.mrb[0].mxu0 %v154
    %v356 = vpop.f32.mrb[0].mxu0
    %v357 = vadd.f32 %v224, %v356
    %v358 = vpop.f32.mrb[0].mxu0
    %v359 = vpop.f32.mrb[0].mxu0
    %v360 = vadd.f32 %v224, %v359
    %v361 = vpop.f32.mrb[0].mxu0
    %362 = vmatprep.mubr.bf16.mxu0 %v219
    %363 = vmatmul.mubr.bf16.gmra.mrb[0].mxu0 %v155
    %v364 = vpop.f32.mrb[0].mxu0
    %v365 = vadd.f32 %v224, %v364
    %v366 = vpop.f32.mrb[0].mxu0
    %v367 = vpop.f32.mrb[0].mxu0
    %v368 = vadd.f32 %v224, %v367
    %v369 = vpop.f32.mrb[0].mxu0
    %370 = vdwg.mxu0
    %v371 = vmax.f32 %v357, 0.0
    %v372 = vmax.f32 %v360, 0.0
    %v373 = vmax.f32 %v365, 0.0
    %v374 = vmax.f32 %v368, 0.0
    %v375 = vpack.c.bf16 %v372, %v371
    %v376 = vpack.c.bf16 %v374, %v373
    %v377 = vld [vmem:[%s4] sm:$0xf]
    %v378 = vld [vmem:[%s4 + $0x4] sm:$0xf]
    %v379 = vld [vmem:[#allocation8] sm:$0xf]
    %v380 = vld [vmem:[#allocation8 + $0x4] sm:$0xf]
    %v381 = vld [vmem:[#allocation8 + $0x8] sm:$0xf]
    %v382 = vld [vmem:[#allocation8 + $0xc] sm:$0xf]
    %v383 = vld [vmem:[#allocation8 + $0x10] sm:$0xf]
    %v384 = vld [vmem:[#allocation8 + $0x14] sm:$0xf]
    %v385 = vld [vmem:[#allocation8 + $0x18] sm:$0xf]
    %v386 = vld [vmem:[#allocation8 + $0x1c] sm:$0xf]
    %v387 = vld [vmem:[#allocation8 + $0x20] sm:$0xf]
    %v388 = vld [vmem:[#allocation8 + $0x24] sm:$0xf]
    %v389 = vld [vmem:[#allocation8 + $0x28] sm:$0xf]
    %v390 = vld [vmem:[#allocation8 + $0x2c] sm:$0xf]
    %v391 = vld [vmem:[#allocation8 + $0x30] sm:$0xf]
    %v392 = vld [vmem:[#allocation8 + $0x34] sm:$0xf]
    %v393 = vld [vmem:[#allocation8 + $0x38] sm:$0xf]
    %v394 = vld [vmem:[#allocation8 + $0x3c] sm:$0xf]
    %v395 = vld [vmem:[#allocation8 + $0x40] sm:$0xf]
    %v396 = vld [vmem:[#allocation8 + $0x44] sm:$0xf]
    %v397 = vld [vmem:[#allocation8 + $0x48] sm:$0xf]
    %v398 = vld [vmem:[#allocation8 + $0x4c] sm:$0xf]
    %v399 = vld [vmem:[#allocation8 + $0x50] sm:$0xf]
    %v400 = vld [vmem:[#allocation8 + $0x54] sm:$0xf]
    %v401 = vld [vmem:[#allocation8 + $0x58] sm:$0xf]
    %v402 = vld [vmem:[#allocation8 + $0x5c] sm:$0xf]
    %v403 = vld [vmem:[#allocation8 + $0x60] sm:$0xf]
    %v404 = vld [vmem:[#allocation8 + $0x64] sm:$0xf]
    %v405 = vld [vmem:[#allocation8 + $0x68] sm:$0xf]
    %v406 = vld [vmem:[#allocation8 + $0x6c] sm:$0xf]
    %v407 = vld [vmem:[#allocation8 + $0x70] sm:$0xf]
    %v408 = vld [vmem:[#allocation8 + $0x74] sm:$0xf]
    %v409 = vld [vmem:[#allocation8 + $0x78] sm:$0xf]
    %v410 = vld [vmem:[#allocation8 + $0x7c] sm:$0xf]
    %v411 = vld [vmem:[%s6] sm:$0x1]
    %v414 = vunpack.c.l.b16 %v377
    %v415 = vunpack.c.l.b16 %v378
    %v416 = vpack.c.b16 %v415, %v414
    %vm417 = vcmask 261120
    %v419 = vsel %vm417, %v416, 0
    %421 = vmatprep.subr.bf16.mxu0 0
    %422 = vmatpush1.bf16.msra.mxu0 %v375
    %423 = vmatprep.subr.bf16.mxu0 0
    %424 = vmatpush1.bf16.msra.mxu0 %v376
    %425 = vmatprep.subr.bf16.mxu0 0
    %426 = vmatpush1.bf16.msra.mxu0 0
    %427 = vmatprep.subr.bf16.mxu0 0
    %428 = vmatpush1.bf16.msra.mxu0 0
    %429 = vmatprep.subr.bf16.mxu0 0
    %430 = vmatpush1.bf16.msra.mxu0 0
    %431 = vmatprep.subr.bf16.mxu0 0
    %432 = vmatpush1.bf16.msra.mxu0 0
    %433 = vmatprep.subr.bf16.mxu0 0
    %434 = vmatpush1.bf16.msra.mxu0 0
    %435 = vmatprep.subr.bf16.mxu0 0
    %436 = vmatpush1.bf16.msra.mxu0 0
    %437 = vmatprep.subr.bf16.mxu0 0
    %438 = vmatpush1.bf16.msra.mxu0 0
    %439 = vmatprep.subr.bf16.mxu0 0
    %440 = vmatpush1.bf16.msra.mxu0 0
    %441 = vmatprep.subr.bf16.mxu0 0
    %442 = vmatpush1.bf16.msra.mxu0 0
    %443 = vmatprep.subr.bf16.mxu0 0
    %444 = vmatpush1.bf16.msra.mxu0 0
    %445 = vmatprep.subr.bf16.mxu0 0
    %446 = vmatpush1.bf16.msra.mxu0 0
    %447 = vmatprep.subr.bf16.mxu0 0
    %448 = vmatpush1.bf16.msra.mxu0 0
    %449 = vmatprep.subr.bf16.mxu0 0
    %450 = vmatpush1.bf16.msra.mxu0 0
    %451 = vmatprep.subr.bf16.mxu0 0
    %452 = vmatpush1.bf16.msra.mxu0 0
    %453 = vmatprep.mubr.bf16.mxu0 0
    %454 = vmatmul.mubr.bf16.gmra.mrb[0].mxu0 %v419
    %v455 = vpop.f32.mrb[0].mxu0
    %v456 = vadd.f32 0.0, %v455
    %v457 = vpop.f32.mrb[0].mxu0
    %v458 = vpop.f32.mrb[0].mxu0
    %v459 = vadd.f32 0.0, %v458
    %v460 = vpop.f32.mrb[0].mxu0
    %461 = vdwg.mxu0
    %v462 = vpack.c.bf16 %v459, %v456
    %v464 = vlaneseq
    %v465 = vshrl.u32 %v464, 7
    %v466 = vsub.s32 0, %v465
    %v467 = vrot.slane %v411, %v466
    %v501 = vunpack.c.l.b16 %v379
    %v502 = vunpack.c.l.b16 %v380
    %v503 = vunpack.c.l.b16 %v381
    %v504 = vunpack.c.l.b16 %v382
    %v505 = vunpack.c.l.b16 %v383
    %v506 = vunpack.c.l.b16 %v384
    %v507 = vunpack.c.l.b16 %v385
    %v508 = vunpack.c.l.b16 %v386
    %v509 = vunpack.c.l.b16 %v387
    %v510 = vunpack.c.l.b16 %v388
    %v511 = vunpack.c.l.b16 %v389
    %v512 = vunpack.c.l.b16 %v390
    %v513 = vunpack.c.l.b16 %v391
    %v514 = vunpack.c.l.b16 %v392
    %v515 = vunpack.c.l.b16 %v393
    %v516 = vunpack.c.l.b16 %v394
    %v517 = vunpack.c.l.b16 %v395
    %v518 = vunpack.c.l.b16 %v396
    %v519 = vunpack.c.l.b16 %v397
    %v520 = vunpack.c.l.b16 %v398
    %v521 = vunpack.c.l.b16 %v399
    %v522 = vunpack.c.l.b16 %v400
    %v523 = vunpack.c.l.b16 %v401
    %v524 = vunpack.c.l.b16 %v402
    %v525 = vunpack.c.l.b16 %v403
    %v526 = vunpack.c.l.b16 %v404
    %v527 = vunpack.c.l.b16 %v405
    %v528 = vunpack.c.l.b16 %v406
    %v529 = vunpack.c.l.b16 %v407
    %v530 = vunpack.c.l.b16 %v408
    %v531 = vunpack.c.l.b16 %v409
    %v532 = vunpack.c.l.b16 %v410
    %v533 = vpack.c.b16 %v502, %v501
    %v534 = vpack.c.b16 %v504, %v503
    %v535 = vpack.c.b16 %v506, %v505
    %v536 = vpack.c.b16 %v508, %v507
    %v537 = vpack.c.b16 %v510, %v509
    %v538 = vpack.c.b16 %v512, %v511
    %v539 = vpack.c.b16 %v514, %v513
    %v540 = vpack.c.b16 %v516, %v515
    %v541 = vpack.c.b16 %v518, %v517
    %v542 = vpack.c.b16 %v520, %v519
    %v543 = vpack.c.b16 %v522, %v521
    %v544 = vpack.c.b16 %v524, %v523
    %v545 = vpack.c.b16 %v526, %v525
    %v546 = vpack.c.b16 %v528, %v527
    %v547 = vpack.c.b16 %v530, %v529
    %v548 = vpack.c.b16 %v532, %v531
    %565 = vmatprep.subr.bf16.mxu0 0
    %566 = vmatpush1.bf16.msra.mxu0 %v533
    %567 = vmatprep.subr.bf16.mxu0 0
    %568 = vmatpush1.bf16.msra.mxu0 %v534
    %569 = vmatprep.subr.bf16.mxu0 0
    %570 = vmatpush1.bf16.msra.mxu0 %v535
    %571 = vmatprep.subr.bf16.mxu0 0
    %572 = vmatpush1.bf16.msra.mxu0 %v536
    %573 = vmatprep.subr.bf16.mxu0 0
    %574 = vmatpush1.bf16.msra.mxu0 %v537
    %575 = vmatprep.subr.bf16.mxu0 0
    %576 = vmatpush1.bf16.msra.mxu0 %v538
    %577 = vmatprep.subr.bf16.mxu0 0
    %578 = vmatpush1.bf16.msra.mxu0 %v539
    %579 = vmatprep.subr.bf16.mxu0 0
    %580 = vmatpush1.bf16.msra.mxu0 %v540
    %581 = vmatprep.subr.bf16.mxu0 0
    %582 = vmatpush1.bf16.msra.mxu0 %v541
    %583 = vmatprep.subr.bf16.mxu0 0
    %584 = vmatpush1.bf16.msra.mxu0 %v542
    %585 = vmatprep.subr.bf16.mxu0 0
    %586 = vmatpush1.bf16.msra.mxu0 %v543
    %587 = vmatprep.subr.bf16.mxu0 0
    %588 = vmatpush1.bf16.msra.mxu0 %v544
    %589 = vmatprep.subr.bf16.mxu0 0
    %590 = vmatpush1.bf16.msra.mxu0 %v545
    %591 = vmatprep.subr.bf16.mxu0 0
    %592 = vmatpush1.bf16.msra.mxu0 %v546
    %593 = vmatprep.subr.bf16.mxu0 0
    %594 = vmatpush1.bf16.msra.mxu0 %v547
    %595 = vmatprep.subr.bf16.mxu0 0
    %596 = vmatpush1.bf16.msra.mxu0 %v548
    %597 = vmatprep.mubr.bf16.mxu0 %v462
    %598 = vmatmul.mubr.bf16.gmra.mrb[0].mxu0 %v375
    %v599 = vpop.f32.mrb[0].mxu0
    %v600 = vadd.f32 %v467, %v599
    %v601 = vpop.f32.mrb[0].mxu0
    %v602 = vpop.f32.mrb[0].mxu0
    %v603 = vadd.f32 %v467, %v602
    %v604 = vpop.f32.mrb[0].mxu0
    %605 = vdwg.mxu0
    %606 = vst [vmem:[#allocation10] sm:$0xff] %v600
    %607 = vst [vmem:[#allocation10 + $0x8] sm:$0xff] %v603
    // Predicated region
    $region46: #{tpu_custom_call.1} parent=1 // pred_check
      _
    $region47: #{tpu_custom_call.1} parent=1 // pred_check_branch
      %609 = sbr.rel (0) target = $region49
    $region48: #{tpu_custom_call.1} parent=1 // pred_region
      %s611 = ssub.s32 256, 256
      %612 = vsyncadd [#allocation4], %s611
      %s613 = sshll.u32 [#allocation10], 4
      %s614 = int_to_ptr.vmem [resolvable:$true] %s613
      %619 = dma.vmem_to_hbm [thread:$0]  %s614, 256, %s7, [#allocation4], 128, 128, 8
    $region49: #{tpu_custom_call.1} parent=1 // pred_fallthru
      _
    // Predicated region
    $region50: #{tpu_custom_call.1} parent=1 // pred_check
      _
    $region51: #{tpu_custom_call.1} parent=1 // pred_check_branch
      %621 = sbr.rel (0) target = $region53
    $region52: #{tpu_custom_call.1} parent=1 // pred_region
      %622 = dma.done [#allocation4], 256
    $region53: #{tpu_custom_call.1} parent=1 // pred_fallthru
      _
    %623 = vsyncpa [#allocation3], 1
    %624 = vsyncpa [#allocation6], 1
    %625 = vsyncpa [#allocation9], 1
    %626 = vsyncpa [#allocation4], 1

</llo_original>
